<compile_context>
chip_gen: v6e
topology: v6e:2x2x1
jax: 0.10.0
libtpu: 0.0.40
codegen_flags: <defaults>
</compile_context>

<pallas_src>
import jax
import jax.numpy as jnp
from jax import lax
from jax.experimental import pallas as pl
from jax.experimental.pallas import tpu as pltpu

D_FEAT = 256  # fixed by nn.Linear(256, 1)


def _round_up(x, m):
    return ((x + m - 1) // m) * m


def mga_kernel(n_ref, pool_ref, w_ref, out_ref, m_sc, l_sc, acc_sc):
    # n_ref:    (1,)      int32 SMEM (scalar prefetch) -- true row count N
    # pool_ref: (TN, 256) f32 VMEM tile (one row-tile of pool_feature)
    # w_ref:    (1, 256)  f32 VMEM (Linear weight row)
    # out_ref:  (1, 256)  f32 VMEM (same block every grid step)
    # m_sc/l_sc:(1, 1)    f32 online-softmax running max / denominator
    # acc_sc:   (1, 256)  f32 running (un-normalized) weighted row sum
    t = pl.program_id(0)
    tn = pool_ref.shape[0]

    @pl.when(t == 0)
    def _init():
        m_sc[...] = jnp.full_like(m_sc, -jnp.inf)
        l_sc[...] = jnp.zeros_like(l_sc)
        acc_sc[...] = jnp.zeros_like(acc_sc)

    pool = pool_ref[...]  # (TN, D)

    # Logits for this row-tile as a lane-dense row vector, on the MXU:
    #   (1, D) contracted with (TN, D) over D  ->  (1, TN)
    logits = lax.dot_general(
        w_ref[...], pool, (((1,), (1,)), ((), ())),
        preferred_element_type=jnp.float32)

    # Mask rows beyond the true N (only the last tile can be padded).
    row_ids = t * tn + lax.broadcasted_iota(jnp.int32, (1, tn), 1)
    logits = jnp.where(row_ids < n_ref[0], logits, -jnp.inf)

    # Online softmax update over the N (row) axis.
    m_prev = m_sc[...]                                              # (1, 1)
    m_new = jnp.maximum(m_prev, jnp.max(logits, axis=1, keepdims=True))
    alpha = jnp.exp(m_prev - m_new)                                 # (1, 1)
    e = jnp.exp(logits - m_new)                                     # (1, TN)
    l_sc[...] = alpha * l_sc[...] + jnp.sum(e, axis=1, keepdims=True)

    # Un-normalized weighted row sum on the MXU: (1, TN) @ (TN, D) -> (1, D).
    contrib = jnp.dot(e, pool, preferred_element_type=jnp.float32)
    acc_sc[...] = alpha * acc_sc[...] + contrib
    m_sc[...] = m_new

    @pl.when(t == pl.num_programs(0) - 1)
    def _finalize():
        out_ref[...] = (acc_sc[...] / l_sc[...]).astype(out_ref.dtype)


def mga_forward(pool_feature, weight, bias=None, *, tile_rows=512):
    """Mga forward.

    pool_feature: (N, 256) f32
    weight:       (1, 256) f32   (nn.Linear(256, 1).weight)
    bias:         accepted for API parity; it cancels in the dim-0 softmax and
                  is therefore not used by the kernel.
    Returns (1, 256) f32.
    """
    del bias  # softmax(x + c, dim=0) == softmax(x, dim=0): bias cancels exactly.
    n, d = pool_feature.shape
    assert d == D_FEAT, f"expected feature dim {D_FEAT}, got {d}"
    pool_feature = pool_feature.astype(jnp.float32)
    weight = weight.astype(jnp.float32)

    # Row-tile size: multiple of 8 (sublane), capped for a fixed VMEM footprint
    # (TN=512 -> 0.5 MiB/tile, 1 MiB double-buffered: fine on v5e/v6e/v7x).
    tn = min(_round_up(tile_rows, 8), _round_up(n, 8))
    n_pad = _round_up(n, tn)
    if n_pad != n:
        pool_feature = jnp.pad(pool_feature, ((0, n_pad - n), (0, 0)))
    num_tiles = n_pad // tn

    n_actual = jnp.array([n], dtype=jnp.int32)

    return pl.pallas_call(
        mga_kernel,
        out_shape=jax.ShapeDtypeStruct((1, d), jnp.float32),
        grid_spec=pltpu.PrefetchScalarGridSpec(
            num_scalar_prefetch=1,
            grid=(num_tiles,),
            in_specs=[
                pl.BlockSpec((tn, d), lambda i, n_s: (i, 0)),   # pool row-tile
                pl.BlockSpec((1, d), lambda i, n_s: (0, 0)),    # weight row
            ],
            out_specs=pl.BlockSpec((1, d), lambda i, n_s: (0, 0)),
            scratch_shapes=[
                pltpu.VMEM((1, 1), jnp.float32),       # running max  m
                pltpu.VMEM((1, 1), jnp.float32),       # running denom l
                pltpu.VMEM((1, D_FEAT), jnp.float32),  # running weighted sum
            ],
        ),
        compiler_params=pltpu.CompilerParams(
            dimension_semantics=("arbitrary",),
        ),
    )(n_actual, pool_feature, weight)


def mga_reference(pool_feature, weight, bias):
    # Pure-JAX reference (elementwise contractions, exact fp32), bias included.
    logits = jnp.sum(pool_feature * weight, axis=1, keepdims=True) + bias.reshape(1, 1)
    attn = jax.nn.softmax(logits, axis=0)
    return jnp.sum(attn * pool_feature, axis=0, keepdims=True)


if __name__ == "__main__":
    key = jax.random.PRNGKey(0)
    k_pool, k_w, k_b = jax.random.split(key, 3)

    # nn.Linear(256, 1) parameters (deterministic).
    weight = jax.random.normal(k_w, (1, D_FEAT), dtype=jnp.float32) / (D_FEAT ** 0.5)
    bias = jax.random.normal(k_b, (1, 1), dtype=jnp.float32) * 0.01

    # Case 1: small N, single tile, no padding.
    n1 = 8
    pool1 = jax.random.normal(k_pool, (n1, D_FEAT), dtype=jnp.float32)
    out1 = jax.block_until_ready(mga_forward(pool1, weight, bias))
    ref1 = mga_reference(pool1, weight, bias)
    assert out1.shape == (1, D_FEAT)
    assert jnp.allclose(out1, ref1, atol=1e-5, rtol=1e-5), "case1 mismatch vs reference"

    # Case 2: multi-tile grid with a padded last tile (exercises online-softmax
    # accumulation across grid steps and the row mask).
    n2 = 37
    pool2 = jax.random.normal(jax.random.fold_in(k_pool, 1), (n2, D_FEAT),
                              dtype=jnp.float32)
    out2 = jax.block_until_ready(mga_forward(pool2, weight, bias, tile_rows=16))
    ref2 = mga_reference(pool2, weight, bias)
    assert out2.shape == (1, D_FEAT)
    assert jnp.allclose(out2, ref2, atol=1e-5, rtol=1e-5), "case2 mismatch vs reference"

    print("KERNEL_OK")
</pallas_src>

<mosaic_0001>
module attributes {stable_mosaic.version = 11 : i64} {
  func.func @mga_kernel(%arg0: i32, %arg1: memref<1xi32, #tpu.memory_space<smem>>, %arg2: memref<8x256xf32, #tpu.memory_space<vmem>>, %arg3: memref<1x256xf32, #tpu.memory_space<vmem>>, %arg4: memref<1x256xf32, #tpu.memory_space<vmem>>, %arg5: memref<1x1xf32, #tpu.memory_space<vmem>>, %arg6: memref<1x1xf32, #tpu.memory_space<vmem>>, %arg7: memref<1x256xf32, #tpu.memory_space<vmem>>) attributes {dimension_semantics = [#tpu.dimension_semantics<arbitrary>], iteration_bounds = array<i64: 1>, scalar_prefetch = 1 : i64, scratch_operands = 3 : i64, tpu.core_type = #tpu.core_type<tc>, window_params = [{transform_indices = @transform_0, window_bounds = array<i64: 8, 256>}, {pipeline_mode = #tpu.pipeline_mode<synchronous>, transform_indices = @transform_1, window_bounds = array<i64: 1, 256>}, {pipeline_mode = #tpu.pipeline_mode<synchronous>, transform_indices = @transform_2, window_bounds = array<i64: 1, 256>}]} {
    %c0_i32 = arith.constant 0 : i32
    %0 = arith.cmpi eq, %arg0, %c0_i32 : i32
    %1 = arith.extui %0 : i1 to i32
    %c0_i32_0 = arith.constant 0 : i32
    %2 = arith.cmpi ne, %1, %c0_i32_0 : i32
    scf.if %2 {
      %cst_23 = arith.constant 0xFF800000 : f32
      %40 = vector.broadcast %cst_23 : f32 to vector<1x1xf32>
      %c0_24 = arith.constant 0 : index
      %c0_25 = arith.constant 0 : index
      %41 = vector.load %arg5[%c0_24, %c0_25] : memref<1x1xf32, #tpu.memory_space<vmem>>, vector<1x1xf32>
      tpu.vector_store %arg5[%c0_24, %c0_25], %40 {strides = array<i32>} : memref<1x1xf32, #tpu.memory_space<vmem>>, vector<1x1xf32>,
      %cst_26 = arith.constant 0.000000e+00 : f32
      %42 = vector.broadcast %cst_26 : f32 to vector<1x1xf32>
      %c0_27 = arith.constant 0 : index
      %c0_28 = arith.constant 0 : index
      %43 = vector.load %arg6[%c0_27, %c0_28] : memref<1x1xf32, #tpu.memory_space<vmem>>, vector<1x1xf32>
      tpu.vector_store %arg6[%c0_27, %c0_28], %42 {strides = array<i32>} : memref<1x1xf32, #tpu.memory_space<vmem>>, vector<1x1xf32>,
      %cst_29 = arith.constant 0.000000e+00 : f32
      %44 = vector.broadcast %cst_29 : f32 to vector<1x256xf32>
      %c0_30 = arith.constant 0 : index
      %c0_31 = arith.constant 0 : index
      %45 = vector.load %arg7[%c0_30, %c0_31] : memref<1x256xf32, #tpu.memory_space<vmem>>, vector<1x256xf32>
      tpu.vector_store %arg7[%c0_30, %c0_31], %44 {strides = array<i32>} : memref<1x256xf32, #tpu.memory_space<vmem>>, vector<1x256xf32>,
    } else {
    }
    %c0 = arith.constant 0 : index
    %c0_1 = arith.constant 0 : index
    %3 = vector.load %arg2[%c0, %c0_1] : memref<8x256xf32, #tpu.memory_space<vmem>>, vector<8x256xf32>
    %c0_2 = arith.constant 0 : index
    %c0_3 = arith.constant 0 : index
    %4 = vector.load %arg3[%c0_2, %c0_3] : memref<1x256xf32, #tpu.memory_space<vmem>>, vector<1x256xf32>
    %cst = arith.constant dense<0.000000e+00> : vector<1x8xf32>
    %5 = tpu.matmul %4, %3, %cst {dimension_numbers = #tpu.dot_dimension_numbers<[1], [1], [0], [0], [0, 0, 1, 0], [], []>} : vector<1x256xf32>, vector<8x256xf32>, vector<1x8xf32> -> vector<1x8xf32>
    %c8_i32 = arith.constant 8 : i32
    %6 = arith.muli %arg0, %c8_i32 : i32
    %7 = tpu.iota {dimensions = array<i32: 1>} : vector<1x8xi32>
    %8 = vector.broadcast %6 : i32 to vector<1x8xi32>
    %9 = arith.addi %8, %7 : vector<1x8xi32>
    %c0_4 = arith.constant 0 : index
    %10 = memref.load %arg1[%c0_4] : memref<1xi32, #tpu.memory_space<smem>>
    %11 = vector.broadcast %10 : i32 to vector<1x8xi32>
    %12 = arith.cmpi slt, %9, %11 : vector<1x8xi32>
    %cst_5 = arith.constant 0xFF800000 : f32
    %13 = vector.broadcast %cst_5 : f32 to vector<1x8xf32>
    %14 = arith.select %12, %5, %13 : vector<1x8xi1>, vector<1x8xf32>
    %c0_6 = arith.constant 0 : index
    %c0_7 = arith.constant 0 : index
    %15 = vector.load %arg5[%c0_6, %c0_7] : memref<1x1xf32, #tpu.memory_space<vmem>>, vector<1x1xf32>
    %cst_8 = arith.constant dense<0xFF800000> : vector<1xf32>
    %16 = vector.multi_reduction <maximumf>, %14, %cst_8 [1] : vector<1x8xf32> to vector<1xf32>
    %17 = vector.shape_cast %16 : vector<1xf32> to vector<1x1xf32>
    %18 = arith.maximumf %15, %17 : vector<1x1xf32>
    %19 = arith.subf %15, %18 : vector<1x1xf32>
    %20 = math.exp %19 : vector<1x1xf32>
    %21 = vector.broadcast %18 : vector<1x1xf32> to vector<1x8xf32>
    %22 = arith.subf %14, %21 : vector<1x8xf32>
    %23 = math.exp %22 : vector<1x8xf32>
    %c0_9 = arith.constant 0 : index
    %c0_10 = arith.constant 0 : index
    %24 = vector.load %arg6[%c0_9, %c0_10] : memref<1x1xf32, #tpu.memory_space<vmem>>, vector<1x1xf32>
    %25 = arith.mulf %20, %24 : vector<1x1xf32>
    %cst_11 = arith.constant dense<0.000000e+00> : vector<1xf32>
    %26 = vector.multi_reduction <add>, %23, %cst_11 [1] : vector<1x8xf32> to vector<1xf32>
    %27 = vector.shape_cast %26 : vector<1xf32> to vector<1x1xf32>
    %28 = arith.addf %25, %27 : vector<1x1xf32>
    %c0_12 = arith.constant 0 : index
    %c0_13 = arith.constant 0 : index
    %29 = vector.load %arg6[%c0_12, %c0_13] : memref<1x1xf32, #tpu.memory_space<vmem>>, vector<1x1xf32>
    tpu.vector_store %arg6[%c0_12, %c0_13], %28 {strides = array<i32>} : memref<1x1xf32, #tpu.memory_space<vmem>>, vector<1x1xf32>,
    %cst_14 = arith.constant dense<0.000000e+00> : vector<1x256xf32>
    %30 = tpu.matmul %23, %3, %cst_14 {dimension_numbers = #tpu.dot_dimension_numbers<[1], [0], [0], [1], [0, 0, 1, 1], [], []>} : vector<1x8xf32>, vector<8x256xf32>, vector<1x256xf32> -> vector<1x256xf32>
    %c0_15 = arith.constant 0 : index
    %c0_16 = arith.constant 0 : index
    %31 = vector.load %arg7[%c0_15, %c0_16] : memref<1x256xf32, #tpu.memory_space<vmem>>, vector<1x256xf32>
    %32 = vector.broadcast %20 : vector<1x1xf32> to vector<1x256xf32>
    %33 = arith.mulf %32, %31 : vector<1x256xf32>
    %34 = arith.addf %33, %30 : vector<1x256xf32>
    %c0_17 = arith.constant 0 : index
    %c0_18 = arith.constant 0 : index
    %35 = vector.load %arg7[%c0_17, %c0_18] : memref<1x256xf32, #tpu.memory_space<vmem>>, vector<1x256xf32>
    tpu.vector_store %arg7[%c0_17, %c0_18], %34 {strides = array<i32>} : memref<1x256xf32, #tpu.memory_space<vmem>>, vector<1x256xf32>,
    %c0_19 = arith.constant 0 : index
    %c0_20 = arith.constant 0 : index
    %36 = vector.load %arg5[%c0_19, %c0_20] : memref<1x1xf32, #tpu.memory_space<vmem>>, vector<1x1xf32>
    tpu.vector_store %arg5[%c0_19, %c0_20], %18 {strides = array<i32>} : memref<1x1xf32, #tpu.memory_space<vmem>>, vector<1x1xf32>,
    %c0_i32_21 = arith.constant 0 : i32
    %37 = arith.cmpi eq, %arg0, %c0_i32_21 : i32
    %38 = arith.extui %37 : i1 to i32
    %c0_i32_22 = arith.constant 0 : i32
    %39 = arith.cmpi ne, %38, %c0_i32_22 : i32
    scf.if %39 {
      %c0_23 = arith.constant 0 : index
      %c0_24 = arith.constant 0 : index
      %40 = vector.load %arg7[%c0_23, %c0_24] : memref<1x256xf32, #tpu.memory_space<vmem>>, vector<1x256xf32>
      %c0_25 = arith.constant 0 : index
      %c0_26 = arith.constant 0 : index
      %41 = vector.load %arg6[%c0_25, %c0_26] : memref<1x1xf32, #tpu.memory_space<vmem>>, vector<1x1xf32>
      %42 = vector.broadcast %41 : vector<1x1xf32> to vector<1x256xf32>
      %43 = arith.divf %40, %42 : vector<1x256xf32>
      %c0_27 = arith.constant 0 : index
      %c0_28 = arith.constant 0 : index
      %44 = vector.load %arg4[%c0_27, %c0_28] : memref<1x256xf32, #tpu.memory_space<vmem>>, vector<1x256xf32>
      tpu.vector_store %arg4[%c0_27, %c0_28], %43 {strides = array<i32>} : memref<1x256xf32, #tpu.memory_space<vmem>>, vector<1x256xf32>,
    } else {
    }
    return
  }
  func.func @transform_0(%arg0: i32, %arg1: memref<1xi32, #tpu.memory_space<smem>>) -> (i32, i32) {
    %c0_i32 = arith.constant 0 : i32
    %c0_i32_0 = arith.constant 0 : i32
    return %arg0, %c0_i32 : i32, i32
  }
  func.func @transform_1(%arg0: i32, %arg1: memref<1xi32, #tpu.memory_space<smem>>) -> (i32, i32) {
    %c0_i32 = arith.constant 0 : i32
    %c0_i32_0 = arith.constant 0 : i32
    %c0_i32_1 = arith.constant 0 : i32
    return %c0_i32, %c0_i32_0 : i32, i32
  }
  func.func @transform_2(%arg0: i32, %arg1: memref<1xi32, #tpu.memory_space<smem>>) -> (i32, i32) {
    %c0_i32 = arith.constant 0 : i32
    %c0_i32_0 = arith.constant 0 : i32
    %c0_i32_1 = arith.constant 0 : i32
    return %c0_i32, %c0_i32_0 : i32, i32
  }
}

</mosaic_0001>

<llo_original>
// kernel: tpu_custom_call.1
$region0: #{tpu_custom_call.1}
  #allocation0 [shape = 'u32[]', space=smem, size = 0x4, offset = 0x4, fixed_abs, tag = 'smem constant byte address 0x4 - core index']
  #allocation1 [shape = 'u32[144,128]{1,0:T(1,128)}', space=vmem, size = 0x12000, scoped, tag = 'internal scratch']
  #allocation2 [shape = 'f32[1,1]{1,0:T(1,128)}', space=vmem, size = 0x200, scoped, tag = 'scratch operand']
  #allocation3 [shape = 'f32[1,1]{1,0:T(1,128)}', space=vmem, size = 0x200, scoped, tag = 'scratch operand']
  #allocation4 [shape = 'f32[1,256]{1,0:T(1,128)}', space=vmem, size = 0x400, scoped, tag = 'scratch operand']
  #allocation5 [shape = 's32[1]{0}', space=sflag, size = 0x4, scoped, tag = 'scoped memory for tpu_custom_call.1']
  #allocation6 [shape = 's32[1]{0:T(128)S(6)}', space=smem, size = 0x200, scoped, tag = 'prefetched SMEM operand 0']
  %s0 = inlined_call_operand.<no memory space> [shape: s32[1], index: 0, kind: input, shape index: {}]
  %s1 = inlined_call_operand.hbm [shape: f32[8,256], index: 1, kind: input, shape index: {}]
  %s2 = inlined_call_operand.vmem [shape: f32[1,256], index: 2, kind: input, shape index: {}]
  %s3 = inlined_call_operand.hbm [shape: f32[1,256], index: 3, kind: output, shape index: {}]
  %s4 = sld [smem:[#allocation0]]
  $region30: #{tpu_custom_call.1} parent=0
    _
  %s6 = ssub.s32 1, %s4
  %s7 = scalar_select 0, %s6, %s4
  %8 = sst [smem:[#allocation6]] %s0
  $region1: #{tpu_custom_call.1} parent=0
    #allocation7 [shape = 'u8[8192]{0}', space=vmem, size = 0x2000, scoped, tag = 'input window, operand 1, single buffered']
    #allocation8 [shape = 's32[1]{0}', space=sflag, size = 0x4, scoped, tag = 'scoped memory for tpu_custom_call.1']
    #allocation9 [shape = 's32[1]{0}', space=sflag, size = 0x4, scoped, tag = 'scoped memory for tpu_custom_call.1']
    #allocation10 [shape = 'u8[1024]{0}', space=vmem, size = 0x400, scoped, tag = 'output window, operand 0, single buffered']
    %9 = vsyncpa [#allocation8], 0
    %10 = vsyncpa [#allocation9], 0
    // Predicated region
    $region2: #{tpu_custom_call.1} parent=1 // pred_check
      _
    $region3: #{tpu_custom_call.1} parent=1 // pred_check_branch
      %12 = sbr.rel (0) target = $region5
    $region4: #{tpu_custom_call.1} parent=1 // pred_region
      %s14 = ssub.s32 256, 256
      %15 = vsyncadd [#allocation8], %s14
      %s17 = sshll.u32 [#allocation7], 4
      %s18 = int_to_ptr.vmem [resolvable:$true] %s17
      %20 = dma.hbm_to_vmem [thread:$0]  %s1, 256, %s18, [#allocation8]
    $region5: #{tpu_custom_call.1} parent=1 // pred_fallthru
      _
    // Predicated region
    $region6: #{tpu_custom_call.1} parent=1 // pred_check
      _
    $region7: #{tpu_custom_call.1} parent=1 // pred_check_branch
      %22 = sbr.rel (0) target = $region9
    $region8: #{tpu_custom_call.1} parent=1 // pred_region
      _
    $region9: #{tpu_custom_call.1} parent=1 // pred_fallthru
      _
    // Predicated region
    $region10: #{tpu_custom_call.1} parent=1 // pred_check
      _
    $region11: #{tpu_custom_call.1} parent=1 // pred_check_branch
      %24 = sbr.rel (0) target = $region13
    $region12: #{tpu_custom_call.1} parent=1 // pred_region
      %25 = dma.done [#allocation8], 256
    $region13: #{tpu_custom_call.1} parent=1 // pred_fallthru
      _
    %p26 = scmp.eq.s32.totalorder 0, 0
    // Predicated region
    $region14: #{tpu_custom_call.1} parent=1 // pred_check
      %p27 = pneg %p26
    $region15: #{tpu_custom_call.1} parent=1 // pred_check_branch
      %29 = sbr.rel (%p27) target = $region17
    $region16: #{tpu_custom_call.1} parent=1 // pred_region
      %vm30 = vcmask 0
      %31 = vst.msk [vmem:[#allocation2] sm:$0x1] %vm30, -inf
      %32 = vst.msk [vmem:[#allocation3] sm:$0x1] %vm30, 0.0
      %v33 = vlaneseq
      %vm34 = vcmp.ge.s32.totalorder %v33, 0
      %vm35 = vcmp.lt.s32.totalorder %v33, 256
      %vm36 = vmand %vm34, %vm35
      %37 = vst.msk [vmem:[#allocation4] sm:$0x3] %vm36, 0.0
    $region17: #{tpu_custom_call.1} parent=1 // pred_fallthru
      _
    %v38 = vld [vmem:[#allocation7] sm:$0xff]
    %v39 = vld [vmem:[#allocation7 + $0x8] sm:$0xff]
    %v40 = vld [vmem:[%s2] sm:$0x3]
    %v42 = vlaneseq
    %v43 = vshrl.u32 %v42, 7
    %v44 = vsub.s32 0, %v43
    %v45 = vrot.slane %v40, %v44
    %v46 = vlaneseq
    %v47 = vshrl.u32 %v46, 7
    %v48 = vsub.s32 1, %v47
    %v49 = vrot.slane %v40, %v48
    %52 = vmatprep.subr.mxu0 0.0
    %53 = vmatpush1.xpose.msra.mxu0 0.0
    %54 = vmatprep.subr.mxu0 0.0
    %55 = vmatpush1.xpose.msra.mxu0 0.0
    %56 = vmatprep.subr.mxu0 0.0
    %57 = vmatpush1.xpose.msra.mxu0 0.0
    %58 = vmatprep.subr.mxu0 0.0
    %59 = vmatpush1.xpose.msra.mxu0 0.0
    %60 = vmatprep.subr.mxu0 0.0
    %61 = vmatpush1.xpose.msra.mxu0 0.0
    %62 = vmatprep.subr.mxu0 0.0
    %63 = vmatpush1.xpose.msra.mxu0 0.0
    %64 = vmatprep.subr.mxu0 0.0
    %65 = vmatpush1.xpose.msra.mxu0 0.0
    %66 = vmatprep.subr.mxu0 0.0
    %67 = vmatpush1.xpose.msra.mxu0 0.0
    %68 = vmatprep.subr.mxu0 0.0
    %69 = vmatpush1.xpose.msra.mxu0 0.0
    %70 = vmatprep.subr.mxu0 0.0
    %71 = vmatpush1.xpose.msra.mxu0 0.0
    %72 = vmatprep.subr.mxu0 0.0
    %73 = vmatpush1.xpose.msra.mxu0 0.0
    %74 = vmatprep.subr.mxu0 0.0
    %75 = vmatpush1.xpose.msra.mxu0 0.0
    %76 = vmatprep.subr.mxu0 0.0
    %77 = vmatpush1.xpose.msra.mxu0 0.0
    %78 = vmatprep.subr.mxu0 0.0
    %79 = vmatpush1.xpose.msra.mxu0 0.0
    %80 = vmatprep.subr.mxu0 0.0
    %81 = vmatpush1.xpose.msra.mxu0 0.0
    %82 = vmatprep.subr.mxu0 %v39
    %83 = vmatpush1.xpose.msra.mxu0 %v38
    %84 = vmatprep.subr.mxu0 0.0
    %85 = vmatpush2.xpose.msra.mxu0 0.0
    %86 = vmatprep.subr.mxu0 0.0
    %87 = vmatpush2.xpose.msra.mxu0 0.0
    %88 = vmatprep.subr.mxu0 0.0
    %89 = vmatpush2.xpose.msra.mxu0 0.0
    %90 = vmatprep.subr.mxu0 0.0
    %91 = vmatpush2.xpose.msra.mxu0 0.0
    %92 = vmatprep.subr.mxu0 0.0
    %93 = vmatpush2.xpose.msra.mxu0 0.0
    %94 = vmatprep.subr.mxu0 0.0
    %95 = vmatpush2.xpose.msra.mxu0 0.0
    %96 = vmatprep.subr.mxu0 0.0
    %97 = vmatpush2.xpose.msra.mxu0 0.0
    %98 = vmatprep.subr.mxu0 0.0
    %99 = vmatpush2.xpose.msra.mxu0 0.0
    %100 = vmatprep.subr.mxu0 0.0
    %101 = vmatpush2.xpose.msra.mxu0 0.0
    %102 = vmatprep.subr.mxu0 0.0
    %103 = vmatpush2.xpose.msra.mxu0 0.0
    %104 = vmatprep.subr.mxu0 0.0
    %105 = vmatpush2.xpose.msra.mxu0 0.0
    %106 = vmatprep.subr.mxu0 0.0
    %107 = vmatpush2.xpose.msra.mxu0 0.0
    %108 = vmatprep.subr.mxu0 0.0
    %109 = vmatpush2.xpose.msra.mxu0 0.0
    %110 = vmatprep.subr.mxu0 0.0
    %111 = vmatpush2.xpose.msra.mxu0 0.0
    %112 = vmatprep.subr.mxu0 0.0
    %113 = vmatpush2.xpose.msra.mxu0 0.0
    %114 = vmatprep.subr.mxu0 0.0
    %115 = vmatpush2.xpose.msra.mxu0 0.0
    %116 = vmatprep.mubr.f32.mxu0 %v49
    %117 = vmatmul.mubr.f32.gmra.mxu0 %v45
    %v118 = vpop.f32.mrf.mxu0
    %v119 = vadd.f32 0.0, %v118
    %v120 = vpop.f32.mrf.mxu0
    %121 = vdwg.mxu0
    %s122 = smul.u32 0, 8
    %v123 = vlaneseq
    %v124 = vand.u32 %v123, 127
    %v125 = vstv %s122
    %v126 = vadd.s32 %v125, %v124
    %s127 = sld [smem:[#allocation6]]
    %v128 = vstv %s127
    %vm129 = vcmp.lt.s32.totalorder %v126, %v128
    %v130 = vsel %vm129, %v119, -inf
    %v131 = vld [vmem:[#allocation2] sm:$0x1]
    %vm132 = vcmask 57344
    %v133 = vsel %vm132, %v130, -inf
    %134 = vmax.xlane.f32.xlu0 %v133
    %v135 = vpop.xlane.xlu0 %134
    %v136 = vmax.f32 %v131, %v135
    %v137 = vsub.f32 %v131, %v136
    %v138 = vmul.f32 %v137, 1.442695
    %v139 = vpow.pop %v138
    %141 = vset.pattern.permute.xlu0 0
    %142 = vperm.xlu0 %141, %v136
    %v143 = vpop.permute.xlu0 %142
    %v145 = vlaneseq
    %v146 = vshrl.u32 %v145, 7
    %v147 = vsub.s32 0, %v146
    %v148 = vrot.slane %v143, %v147
    %v149 = vsub.f32 %v130, %v148
    %v150 = vmul.f32 %v149, 1.442695
    %v151 = vpow.pop %v150
    %v152 = vld [vmem:[#allocation3] sm:$0x1]
    %v153 = vmul.f32 %v139, %v152
    %v154 = vsel %vm132, %v151, 0.0
    %155 = vadd.xlane.f32.xlu0 %v154
    %v156 = vpop.xlane.xlu0 %155
    %v157 = vadd.f32 %v153, %v156
    %vm158 = vcmask 0
    %159 = vst.msk [vmem:[#allocation3] sm:$0x1] %vm158, %v157
    %vm160 = vcmask 64512
    %v162 = vsel %vm160, %v151, 0
    %164 = vmatprep.subr.mxu0 0.0
    %165 = vmatpush1.msra.mxu0 0.0
    %166 = vmatprep.subr.mxu0 0.0
    %167 = vmatpush1.msra.mxu0 0.0
    %168 = vmatprep.subr.mxu0 0.0
    %169 = vmatpush1.msra.mxu0 0.0
    %170 = vmatprep.subr.mxu0 0.0
    %171 = vmatpush1.msra.mxu0 0.0
    %172 = vmatprep.subr.mxu0 0.0
    %173 = vmatpush1.msra.mxu0 0.0
    %174 = vmatprep.subr.mxu0 0.0
    %175 = vmatpush1.msra.mxu0 0.0
    %176 = vmatprep.subr.mxu0 0.0
    %177 = vmatpush1.msra.mxu0 0.0
    %178 = vmatprep.subr.mxu0 0.0
    %179 = vmatpush1.msra.mxu0 0.0
    %180 = vmatprep.subr.mxu0 0.0
    %181 = vmatpush1.msra.mxu0 0.0
    %182 = vmatprep.subr.mxu0 0.0
    %183 = vmatpush1.msra.mxu0 0.0
    %184 = vmatprep.subr.mxu0 0.0
    %185 = vmatpush1.msra.mxu0 0.0
    %186 = vmatprep.subr.mxu0 0.0
    %187 = vmatpush1.msra.mxu0 0.0
    %188 = vmatprep.subr.mxu0 0.0
    %189 = vmatpush1.msra.mxu0 0.0
    %190 = vmatprep.subr.mxu0 0.0
    %191 = vmatpush1.msra.mxu0 0.0
    %192 = vmatprep.subr.mxu0 0.0
    %193 = vmatpush1.msra.mxu0 0.0
    %194 = vmatprep.subr.mxu0 %v39
    %195 = vmatpush1.msra.mxu0 %v38
    %196 = vmatprep.subr.mxu0 0.0
    %197 = vmatpush2.msra.mxu0 0.0
    %198 = vmatprep.subr.mxu0 0.0
    %199 = vmatpush2.msra.mxu0 0.0
    %200 = vmatprep.subr.mxu0 0.0
    %201 = vmatpush2.msra.mxu0 0.0
    %202 = vmatprep.subr.mxu0 0.0
    %203 = vmatpush2.msra.mxu0 0.0
    %204 = vmatprep.subr.mxu0 0.0
    %205 = vmatpush2.msra.mxu0 0.0
    %206 = vmatprep.subr.mxu0 0.0
    %207 = vmatpush2.msra.mxu0 0.0
    %208 = vmatprep.subr.mxu0 0.0
    %209 = vmatpush2.msra.mxu0 0.0
    %210 = vmatprep.subr.mxu0 0.0
    %211 = vmatpush2.msra.mxu0 0.0
    %212 = vmatprep.subr.mxu0 0.0
    %213 = vmatpush2.msra.mxu0 0.0
    %214 = vmatprep.subr.mxu0 0.0
    %215 = vmatpush2.msra.mxu0 0.0
    %216 = vmatprep.subr.mxu0 0.0
    %217 = vmatpush2.msra.mxu0 0.0
    %218 = vmatprep.subr.mxu0 0.0
    %219 = vmatpush2.msra.mxu0 0.0
    %220 = vmatprep.subr.mxu0 0.0
    %221 = vmatpush2.msra.mxu0 0.0
    %222 = vmatprep.subr.mxu0 0.0
    %223 = vmatpush2.msra.mxu0 0.0
    %224 = vmatprep.subr.mxu0 0.0
    %225 = vmatpush2.msra.mxu0 0.0
    %226 = vmatprep.subr.mxu0 0.0
    %227 = vmatpush2.msra.mxu0 0.0
    %228 = vmatprep.mubr.f32.mxu0 0.0
    %229 = vmatmul.mubr.f32.gmra.mxu0 %v162
    %v230 = vpop.f32.mrf.mxu0
    %v231 = vadd.f32 0.0, %v230
    %v232 = vpop.f32.mrf.mxu0
    %v233 = vadd.f32 0.0, %v232
    %234 = vdwg.mxu0
    %v235 = vld [vmem:[#allocation4] sm:$0x3]
    %237 = vset.pattern.permute.xlu0 0
    %238 = vperm.xlu0 %237, %v139
    %v239 = vpop.permute.xlu0 %238
    %v241 = vlaneseq
    %v242 = vshrl.u32 %v241, 7
    %v243 = vsub.s32 0, %v242
    %v244 = vrot.slane %v239, %v243
    %v245 = vmul.f32 %v244, %v235
    %v248 = vcombine.low %v231, %v233
    %v250 = vunpack.c.l.s4 1966171168
    %v251 = vunpack.c.0.s8 %v250
    %v252 = vlaneseq
    %v253 = vshrl.u32 %v252, 7
    %v254 = vsub.s32 %v251, %v253
    %v255 = vrot.slane %v248, %v254
    %v257 = vunpack.c.l.s4 1966171168
    %v258 = vunpack.c.0.s8 %v257
    %v259 = vlaneseq
    %v260 = vshrl.u32 %v259, 7
    %v261 = vsub.s32 %v258, %v260
    %v262 = vrot.slane %v255, %v261
    %v264 = vadd.f32 %v245, %v262
    %v265 = vlaneseq
    %vm266 = vcmp.ge.s32.totalorder %v265, 0
    %vm267 = vcmp.lt.s32.totalorder %v265, 256
    %vm268 = vmand %vm266, %vm267
    %269 = vst.msk [vmem:[#allocation4] sm:$0x3] %vm268, %v264
    %270 = vst.msk [vmem:[#allocation2] sm:$0x1] %vm158, %v136
    // Predicated region
    $region18: #{tpu_custom_call.1} parent=1 // pred_check
      %p271 = pneg %p26
    $region19: #{tpu_custom_call.1} parent=1 // pred_check_branch
      %273 = sbr.rel (%p271) target = $region21
    $region20: #{tpu_custom_call.1} parent=1 // pred_region
      %v274 = vld [vmem:[#allocation4] sm:$0x3]
      %v275 = vld [vmem:[#allocation3] sm:$0x1]
      %277 = vset.pattern.permute.xlu0 0
      %278 = vperm.xlu0 %277, %v275
      %v279 = vpop.permute.xlu0 %278
      %v281 = vlaneseq
      %v282 = vshrl.u32 %v281, 7
      %v283 = vsub.s32 0, %v282
      %v284 = vrot.slane %v279, %v283
      %v285 = vrcp.pop %v284
      %v286 = vmul.f32 %v274, %v285
      %287 = vst.msk [vmem:[#allocation10] sm:$0x3] %vm268, %v286
    $region21: #{tpu_custom_call.1} parent=1 // pred_fallthru
      _
    // Predicated region
    $region22: #{tpu_custom_call.1} parent=1 // pred_check
      _
    $region23: #{tpu_custom_call.1} parent=1 // pred_check_branch
      %289 = sbr.rel (0) target = $region25
    $region24: #{tpu_custom_call.1} parent=1 // pred_region
      %s291 = ssub.s32 32, 32
      %292 = vsyncadd [#allocation9], %s291
      %s294 = sshll.u32 [#allocation10], 4
      %s295 = int_to_ptr.vmem [resolvable:$true] %s294
      %297 = dma.vmem_to_hbm [thread:$0]  %s295, 32, %s3, [#allocation9]
    $region25: #{tpu_custom_call.1} parent=1 // pred_fallthru
      _
    // Predicated region
    $region26: #{tpu_custom_call.1} parent=1 // pred_check
      _
    $region27: #{tpu_custom_call.1} parent=1 // pred_check_branch
      %299 = sbr.rel (0) target = $region29
    $region28: #{tpu_custom_call.1} parent=1 // pred_region
      %300 = dma.done [#allocation9], 32
    $region29: #{tpu_custom_call.1} parent=1 // pred_fallthru
      _
    %301 = vsyncpa [#allocation8], 1
    %302 = vsyncpa [#allocation9], 1

</llo_original>
